<compile_context>
chip_gen: v7x
topology: tpu7x:2x2x1
jax: 0.10.0
libtpu: 0.0.40
codegen_flags: <defaults>
</compile_context>

<pallas_src>
import functools
import math

import jax
import jax.numpy as jnp
from jax.experimental import pallas as pl
from jax.experimental.pallas import tpu as pltpu


_LANES = 128
_MIB = 1024 * 1024


# ----------------------------------------------------------------------------
# Hardware-aware sizing helpers.
# ----------------------------------------------------------------------------
def _sublane_multiple(dtype):
    # 4-byte -> 8, 2-byte -> 16, 1-byte -> 32 sublanes per packed tile.
    return max(8, 32 // max(1, jnp.dtype(dtype).itemsize))


def _vmem_capacity_bytes():
    try:
        return int(pltpu.get_tpu_info().vmem_capacity_bytes)
    except Exception:
        return 64 * _MIB          # conservative fallback (v7x-sized)


def _block_budget_bytes(override):
    if override is not None:
        return int(override)
    # ~4 MiB logits blocks on 128 MiB-VMEM parts (v5e/v6e), ~2 MiB on 64 MiB (v7x).
    return 4 * _MIB if _vmem_capacity_bytes() >= 96 * _MIB else 2 * _MIB


def _vmem_limit_bytes():
    cap = _vmem_capacity_bytes()
    return int(min(cap * 3 // 4, 96 * _MIB))


def _pick_rows(n_rows, c, x_dtype, t_dtype, budget_bytes):
    mult = max(_sublane_multiple(x_dtype), _sublane_multiple(t_dtype))
    r = budget_bytes // max(1, c * _LANES * jnp.dtype(x_dtype).itemsize)
    r = max(mult, (r // mult) * mult)
    # Using the full row extent for a single-step grid is always layout-legal.
    return n_rows if n_rows <= r else r


# ----------------------------------------------------------------------------
# Pallas kernel: fused per-class partial sums for the Dice loss.
#   x_ref : (1, C, R, 128) logits block (native dtype, cast to f32 in-kernel)
#   t_ref : (1, R, 128) int class indices  OR  (1, C, R, 128) float map
#   o_ref : (1, 3, C, 128) resident accumulator  [inter, psum, tsum]
# Grid = (batch, row_tiles); row_tiles is the reduction ("arbitrary") axis and
# may be ragged — the last block's out-of-range tail is masked here.
# ----------------------------------------------------------------------------
def _dice_sums_kernel(x_ref, t_ref, out_ref, *, use_sigmoid, target_is_index,
                      squared_pred, n_channels, rows_per_step, n_valid,
                      has_tail):
    j = pl.program_id(1)

    @pl.when(j == 0)
    def _init():
        out_ref[...] = jnp.zeros_like(out_ref)

    x = x_ref[0].astype(jnp.float32)                       # (C, R, 128)
    if use_sigmoid:
        p = jax.nn.sigmoid(x)
    else:
        m = jnp.max(x, axis=0, keepdims=True)
        e = jnp.exp(x - m)
        # Reciprocal hoist: one (R,128) divide, then C broadcast multiplies.
        p = e * (1.0 / jnp.sum(e, axis=0, keepdims=True))

    def _accumulate(valid):                                # valid: (R,128) bool | None
        pm = p if valid is None else jnp.where(valid[None], p, 0.0)
        if squared_pred:
            psum = jnp.sum(pm * pm, axis=1)                # (C, 128)
        else:
            psum = jnp.sum(pm, axis=1)

        if target_is_index:
            tgt = t_ref[0]                                 # (R, 128) int32
            inter_rows, tsum_rows = [], []
            for ci in range(n_channels):                   # short unrolled loop
                sel = tgt == ci
                if valid is not None:
                    sel = jnp.logical_and(sel, valid)
                inter_rows.append(
                    jnp.sum(jnp.where(sel, p[ci], 0.0), axis=0, keepdims=True))
                # one-hot targets: t*t == t, so count works for squared_pred too
                tsum_rows.append(
                    jnp.sum(sel.astype(jnp.float32), axis=0, keepdims=True))
            inter = jnp.concatenate(inter_rows, axis=0)    # (C, 128)
            tsum = jnp.concatenate(tsum_rows, axis=0)      # (C, 128)
        else:
            tt = t_ref[0].astype(jnp.float32)              # (C, R, 128)
            if valid is not None:
                tt = jnp.where(valid[None], tt, 0.0)
            inter = jnp.sum(pm * tt, axis=1)
            tsum = jnp.sum(tt * tt, axis=1) if squared_pred else jnp.sum(tt, axis=1)

        out_ref[0, 0] += inter
        out_ref[0, 1] += psum
        out_ref[0, 2] += tsum

    if not has_tail:
        _accumulate(None)
    else:
        last = pl.num_programs(1) - 1

        @pl.when(j != last)
        def _full():
            _accumulate(None)

        @pl.when(j == last)
        def _tail():
            row = (jax.lax.broadcasted_iota(
                       jnp.int32, (rows_per_step, _LANES), 0)
                   + j * rows_per_step)
            lane = jax.lax.broadcasted_iota(
                jnp.int32, (rows_per_step, _LANES), 1)
            _accumulate(row * _LANES + lane < n_valid)


def _dice_sums(x3, t, n, *, use_sigmoid, target_is_index, squared_pred,
               max_block_bytes=None):
    """x3: (B, C, N) logits; t: (B, N) int indices or (B, C, N) float map.
    Returns (3, C) float32: [intersection, pred_sum, target_sum] per class."""
    b, c, _ = x3.shape
    rows = -(-n // _LANES)
    n_arr = rows * _LANES
    if n_arr != n:
        # Only when N is not a multiple of 128: the lane-dense (rows, 128)
        # view needs <=127 pad elements per channel (pad values are masked
        # in-kernel, so plain zeros are fine).  The common aligned case takes
        # the pad-free path; ragged *grid* tails are masked, never padded.
        x3 = jnp.pad(x3, ((0, 0), (0, 0), (0, n_arr - n)))
        if target_is_index:
            t = jnp.pad(t, ((0, 0), (0, n_arr - n)))
        else:
            t = jnp.pad(t, ((0, 0), (0, 0), (0, n_arr - n)))

    r = _pick_rows(rows, c, x3.dtype, t.dtype, _block_budget_bytes(max_block_bytes))
    num_tiles = -(-rows // r)
    has_tail = (num_tiles * r * _LANES) > n

    x4 = x3.reshape(b, c, rows, _LANES)
    if target_is_index:
        t4 = t.reshape(b, rows, _LANES)
        t_spec = pl.BlockSpec((1, r, _LANES), lambda bi, j: (bi, j, 0))
    else:
        t4 = t.reshape(b, c, rows, _LANES)
        t_spec = pl.BlockSpec((1, c, r, _LANES), lambda bi, j: (bi, 0, j, 0))

    kernel = functools.partial(
        _dice_sums_kernel,
        use_sigmoid=use_sigmoid, target_is_index=target_is_index,
        squared_pred=squared_pred, n_channels=c, rows_per_step=r,
        n_valid=n, has_tail=has_tail)

    out = pl.pallas_call(
        kernel,
        out_shape=jax.ShapeDtypeStruct((b, 3, c, _LANES), jnp.float32),
        grid_spec=pltpu.PrefetchScalarGridSpec(
            num_scalar_prefetch=0,
            grid=(b, num_tiles),
            in_specs=[pl.BlockSpec((1, c, r, _LANES),
                                   lambda bi, j: (bi, 0, j, 0)),
                      t_spec],
            out_specs=pl.BlockSpec((1, 3, c, _LANES),
                                   lambda bi, j: (bi, 0, 0, 0)),
        ),
        compiler_params=pltpu.CompilerParams(
            # NOTE: on v7x, pltpu.CORE_PARALLEL on the batch axis would shard
            # across both TensorCores even for B==1; kept portable here.
            dimension_semantics=("parallel", "arbitrary"),
            vmem_limit_bytes=_vmem_limit_bytes()),
    )(x4, t4)

    return jnp.sum(out, axis=(0, 3))                       # (3, C)


# ----------------------------------------------------------------------------
# DiceLoss forward (matches the PyTorch module's semantics).
# ----------------------------------------------------------------------------
def dice_loss(inputs, target, weight=None, *, smooth=1e-5, squared_pred=False,
              reduction="mean", include_background=False, _max_block_bytes=None):
    b = inputs.shape[0]
    c = inputs.shape[1]

    if c == 1:
        # Binary / single-channel path: sigmoid + flattened global sums.
        if target.ndim != inputs.ndim:
            target = target[:, None]
        n = math.prod(inputs.shape[2:])
        x3 = inputs.reshape(b, 1, n)
        t3 = target.reshape(b, 1, n)                       # native dtype, cast in-kernel
        sums = _dice_sums(x3, t3, n, use_sigmoid=True, target_is_index=False,
                          squared_pred=squared_pred,
                          max_block_bytes=_max_block_bytes)
        inter, psum, tsum = sums[0, 0], sums[1, 0], sums[2, 0]
        dice = (2.0 * inter + smooth) / (psum + tsum + smooth)
        loss = 1.0 - dice
        if reduction == "sum":
            return loss * (b * n)      # torch: dice_loss * input.view(-1).size(0)
        return loss                    # "mean" and "none" both return the scalar

    # Multi-class path: softmax over channels, per-class dice, weighted mean.
    n = math.prod(inputs.shape[2:])
    x3 = inputs.reshape(b, c, n)
    if target.ndim != inputs.ndim:
        t = target.reshape(b, n).astype(jnp.int32)         # class indices (small stream)
        target_is_index = True
    else:
        t = target.reshape(b, c, n)                        # one-hot / soft labels, native dtype
        target_is_index = False

    sums = _dice_sums(x3, t, n, use_sigmoid=False,
                      target_is_index=target_is_index, squared_pred=squared_pred,
                      max_block_bytes=_max_block_bytes)
    inter, psum, tsum = sums[0], sums[1], sums[2]          # (C,)
    dice = (2.0 * inter + smooth) / (psum + tsum + smooth)
    loss_per_class = 1.0 - dice

    start = 0 if include_background else 1
    lc = loss_per_class[start:]
    if weight is not None:
        lc = lc * weight[start:].astype(jnp.float32)
    return jnp.sum(lc) / (c - start)


# ----------------------------------------------------------------------------
# Pure-JAX reference (mirrors the PyTorch forward) for validation.
# ----------------------------------------------------------------------------
def dice_loss_ref(inputs, target, weight=None, *, smooth=1e-5,
                  squared_pred=False, reduction="mean",
                  include_background=False):
    c = inputs.shape[1]
    if c == 1:
        if target.ndim != inputs.ndim:
            target = target[:, None]
        p = jax.nn.sigmoid(inputs.astype(jnp.float32)).reshape(-1)
        t = target.reshape(-1).astype(jnp.float32)
        inter = jnp.sum(p * t)
        denom = (jnp.sum(p * p) + jnp.sum(t * t)) if squared_pred \
            else (jnp.sum(p) + jnp.sum(t))
        loss = 1.0 - (2.0 * inter + smooth) / (denom + smooth)
        if reduction == "sum":
            return loss * p.shape[0]
        return loss
    if target.ndim != inputs.ndim:
        target = jnp.moveaxis(
            jax.nn.one_hot(target.astype(jnp.int32), c, dtype=jnp.float32),
            -1, 1)
    p = jax.nn.softmax(inputs.astype(jnp.float32), axis=1)
    start = 0 if include_background else 1
    total = 0.0
    for i in range(start, c):
        pi = p[:, i].reshape(-1)
        ti = target[:, i].reshape(-1).astype(jnp.float32)
        inter = jnp.sum(pi * ti)
        denom = (jnp.sum(pi * pi) + jnp.sum(ti * ti)) if squared_pred \
            else (jnp.sum(pi) + jnp.sum(ti))
        li = 1.0 - (2.0 * inter + smooth) / (denom + smooth)
        if weight is not None:
            li = li * weight[i]
        total = total + li
    return total / (c - start)


if __name__ == "__main__":
    key = jax.random.PRNGKey(0)
    ks = jax.random.split(key, 8)

    def check(a, b_, msg):
        a = jax.block_until_ready(a)
        assert jnp.allclose(a, b_, rtol=1e-5, atol=1e-5), (msg, a, b_)

    # --- multi-class: logits [B, C, H, W], integer class targets [B, H, W]
    B, C, H, W = 2, 4, 16, 16
    x = jax.random.normal(ks[0], (B, C, H, W), dtype=jnp.float32)
    tgt_idx = jax.random.randint(ks[1], (B, H, W), 0, C)
    weight = jnp.array([1.0, 2.0, 0.5, 1.5], dtype=jnp.float32)

    check(dice_loss(x, tgt_idx, weight), dice_loss_ref(x, tgt_idx, weight),
          "mc-index")
    check(dice_loss(x, tgt_idx, squared_pred=True),
          dice_loss_ref(x, tgt_idx, squared_pred=True), "mc-sq")

    # one-hot target provided directly (same ndim as input)
    tgt_oh = jnp.moveaxis(jax.nn.one_hot(tgt_idx, C, dtype=jnp.float32), -1, 1)
    check(dice_loss(x, tgt_oh, weight, squared_pred=True),
          dice_loss_ref(x, tgt_oh, weight, squared_pred=True), "mc-onehot")

    # odd spatial size (13x13): exercises the lane-tail mask (tiny <=127 pad)
    Ho, Wo = 13, 13
    xo = jax.random.normal(ks[2], (B, C, Ho, Wo), dtype=jnp.float32)
    to = jax.random.randint(ks[3], (B, Ho, Wo), 0, C)
    check(dice_loss(xo, to, include_background=True),
          dice_loss_ref(xo, to, include_background=True), "mc-tail")

    # multi-tile grid where the block does NOT divide the row count but the
    # flat size IS a multiple of 128: pad-free ragged last block whose garbage
    # tail is masked in-kernel (block size forced small to keep the test tiny).
    Hr, Wr = 48, 48                 # n = 2304 = 18 * 128; r forced to 8 -> 3 tiles
    small_blk = 8 * C * _LANES * 4
    xr = jax.random.normal(ks[4], (B, C, Hr, Wr), dtype=jnp.float32)
    tr = jax.random.randint(ks[5], (B, Hr, Wr), 0, C)
    check(dice_loss(xr, tr, weight, _max_block_bytes=small_blk),
          dice_loss_ref(xr, tr, weight), "mc-ragged-grid")
    check(dice_loss(xr, tr, squared_pred=True, _max_block_bytes=small_blk),
          dice_loss_ref(xr, tr, squared_pred=True), "mc-ragged-grid-sq")

    # ragged grid AND ragged lane tail together (36x36 -> 11 rows, r=8 -> 2 tiles)
    Hm, Wm = 36, 36
    xm = jax.random.normal(ks[6], (B, C, Hm, Wm), dtype=jnp.float32)
    tm = jax.random.randint(ks[7], (B, Hm, Wm), 0, C)
    check(dice_loss(xm, tm, _max_block_bytes=small_blk),
          dice_loss_ref(xm, tm), "mc-ragged-both")

    # --- single-channel (sigmoid) path: logits [B, 1, H, W], target [B, H, W]
    xb = jax.random.normal(ks[0], (B, 1, H, W), dtype=jnp.float32)
    tb = (jax.random.uniform(ks[1], (B, H, W)) > 0.5).astype(jnp.float32)
    check(dice_loss(xb, tb), dice_loss_ref(xb, tb), "bin")
    check(dice_loss(xb, tb, reduction="sum"),
          dice_loss_ref(xb, tb, reduction="sum"), "bin-sum")

    # binary odd spatial size -> lane-tail mask path
    xbo = jax.random.normal(ks[2], (B, 1, Ho, Wo), dtype=jnp.float32)
    tbo = (jax.random.uniform(ks[3], (B, Ho, Wo)) > 0.5).astype(jnp.float32)
    check(dice_loss(xbo, tbo, squared_pred=True),
          dice_loss_ref(xbo, tbo, squared_pred=True), "bin-tail")

    print("KERNEL_OK")
</pallas_src>

<mosaic_0001>
module attributes {stable_mosaic.version = 11 : i64} {
  func.func @_dice_sums_kernel(%arg0: i32, %arg1: i32, %arg2: memref<1x4x2x128xf32, #tpu.memory_space<vmem>>, %arg3: memref<1x2x128xi32, #tpu.memory_space<vmem>>, %arg4: memref<1x3x4x128xf32, #tpu.memory_space<vmem>>) attributes {dimension_semantics = [#tpu.dimension_semantics<parallel>, #tpu.dimension_semantics<arbitrary>], iteration_bounds = array<i64: 2, 1>, scalar_prefetch = 0 : i64, scratch_operands = 0 : i64, tpu.core_type = #tpu.core_type<tc>, window_params = [{transform_indices = @transform_0, window_bounds = array<i64: 1, 4, 2, 128>}, {transform_indices = @transform_1, window_bounds = array<i64: 1, 2, 128>}, {transform_indices = @transform_2, window_bounds = array<i64: 1, 3, 4, 128>}]} {
    %c0_i32 = arith.constant 0 : i32
    %0 = arith.cmpi eq, %arg1, %c0_i32 : i32
    %1 = arith.extui %0 : i1 to i32
    %c0_i32_0 = arith.constant 0 : i32
    %2 = arith.cmpi ne, %1, %c0_i32_0 : i32
    scf.if %2 {
      %cst_45 = arith.constant 0.000000e+00 : f32
      %87 = vector.broadcast %cst_45 : f32 to vector<1x3x4x128xf32>
      %c0_46 = arith.constant 0 : index
      %c0_47 = arith.constant 0 : index
      %c0_48 = arith.constant 0 : index
      %c0_49 = arith.constant 0 : index
      %88 = vector.load %arg4[%c0_46, %c0_47, %c0_48, %c0_49] : memref<1x3x4x128xf32, #tpu.memory_space<vmem>>, vector<1x3x4x128xf32>
      tpu.vector_store %arg4[%c0_46, %c0_47, %c0_48, %c0_49], %87 {strides = array<i32>} : memref<1x3x4x128xf32, #tpu.memory_space<vmem>>, vector<1x3x4x128xf32>,
    } else {
    }
    %c0 = arith.constant 0 : index
    %c0_1 = arith.constant 0 : index
    %c0_2 = arith.constant 0 : index
    %c0_3 = arith.constant 0 : index
    %3 = vector.load %arg2[%c0, %c0_1, %c0_2, %c0_3] : memref<1x4x2x128xf32, #tpu.memory_space<vmem>>, vector<1x4x2x128xf32>
    %4 = vector.shape_cast %3 : vector<1x4x2x128xf32> to vector<4x2x128xf32>
    %cst = arith.constant dense<0xFF800000> : vector<2x128xf32>
    %5 = vector.multi_reduction <maximumf>, %4, %cst [0] : vector<4x2x128xf32> to vector<2x128xf32>
    %6 = vector.shape_cast %5 : vector<2x128xf32> to vector<1x2x128xf32>
    %7 = vector.broadcast %6 : vector<1x2x128xf32> to vector<4x2x128xf32>
    %8 = arith.subf %4, %7 : vector<4x2x128xf32>
    %9 = math.exp %8 : vector<4x2x128xf32>
    %cst_4 = arith.constant dense<0.000000e+00> : vector<2x128xf32>
    %10 = vector.multi_reduction <add>, %9, %cst_4 [0] : vector<4x2x128xf32> to vector<2x128xf32>
    %11 = vector.shape_cast %10 : vector<2x128xf32> to vector<1x2x128xf32>
    %cst_5 = arith.constant 1.000000e+00 : f32
    %12 = vector.broadcast %cst_5 : f32 to vector<1x2x128xf32>
    %13 = arith.divf %12, %11 : vector<1x2x128xf32>
    %14 = vector.broadcast %13 : vector<1x2x128xf32> to vector<4x2x128xf32>
    %15 = arith.mulf %9, %14 : vector<4x2x128xf32>
    %cst_6 = arith.constant dense<0.000000e+00> : vector<4x128xf32>
    %16 = vector.multi_reduction <add>, %15, %cst_6 [1] : vector<4x2x128xf32> to vector<4x128xf32>
    %c0_7 = arith.constant 0 : index
    %c0_8 = arith.constant 0 : index
    %c0_9 = arith.constant 0 : index
    %17 = vector.load %arg3[%c0_7, %c0_8, %c0_9] : memref<1x2x128xi32, #tpu.memory_space<vmem>>, vector<1x2x128xi32>
    %18 = vector.shape_cast %17 : vector<1x2x128xi32> to vector<2x128xi32>
    %c0_i32_10 = arith.constant 0 : i32
    %19 = vector.broadcast %c0_i32_10 : i32 to vector<2x128xi32>
    %20 = arith.cmpi eq, %18, %19 : vector<2x128xi32>
    %21 = vector.extract_strided_slice %15 {offsets = [0, 0, 0], sizes = [1, 2, 128], strides = [1, 1, 1]} : vector<4x2x128xf32> to vector<1x2x128xf32>
    %22 = vector.shape_cast %21 : vector<1x2x128xf32> to vector<2x128xf32>
    %cst_11 = arith.constant 0.000000e+00 : f32
    %23 = vector.broadcast %cst_11 : f32 to vector<2x128xf32>
    %24 = arith.select %20, %22, %23 : vector<2x128xi1>, vector<2x128xf32>
    %cst_12 = arith.constant dense<0.000000e+00> : vector<128xf32>
    %25 = vector.multi_reduction <add>, %24, %cst_12 [0] : vector<2x128xf32> to vector<128xf32>
    %26 = vector.shape_cast %25 : vector<128xf32> to vector<1x128xf32>
    %27 = arith.extui %20 : vector<2x128xi1> to vector<2x128xi32>
    %28 = arith.sitofp %27 : vector<2x128xi32> to vector<2x128xf32>
    %cst_13 = arith.constant dense<0.000000e+00> : vector<128xf32>
    %29 = vector.multi_reduction <add>, %28, %cst_13 [0] : vector<2x128xf32> to vector<128xf32>
    %30 = vector.shape_cast %29 : vector<128xf32> to vector<1x128xf32>
    %c1_i32 = arith.constant 1 : i32
    %31 = vector.broadcast %c1_i32 : i32 to vector<2x128xi32>
    %32 = arith.cmpi eq, %18, %31 : vector<2x128xi32>
    %33 = vector.extract_strided_slice %15 {offsets = [1, 0, 0], sizes = [1, 2, 128], strides = [1, 1, 1]} : vector<4x2x128xf32> to vector<1x2x128xf32>
    %34 = vector.shape_cast %33 : vector<1x2x128xf32> to vector<2x128xf32>
    %cst_14 = arith.constant 0.000000e+00 : f32
    %35 = vector.broadcast %cst_14 : f32 to vector<2x128xf32>
    %36 = arith.select %32, %34, %35 : vector<2x128xi1>, vector<2x128xf32>
    %cst_15 = arith.constant dense<0.000000e+00> : vector<128xf32>
    %37 = vector.multi_reduction <add>, %36, %cst_15 [0] : vector<2x128xf32> to vector<128xf32>
    %38 = vector.shape_cast %37 : vector<128xf32> to vector<1x128xf32>
    %39 = arith.extui %32 : vector<2x128xi1> to vector<2x128xi32>
    %40 = arith.sitofp %39 : vector<2x128xi32> to vector<2x128xf32>
    %cst_16 = arith.constant dense<0.000000e+00> : vector<128xf32>
    %41 = vector.multi_reduction <add>, %40, %cst_16 [0] : vector<2x128xf32> to vector<128xf32>
    %42 = vector.shape_cast %41 : vector<128xf32> to vector<1x128xf32>
    %c2_i32 = arith.constant 2 : i32
    %43 = vector.broadcast %c2_i32 : i32 to vector<2x128xi32>
    %44 = arith.cmpi eq, %18, %43 : vector<2x128xi32>
    %45 = vector.extract_strided_slice %15 {offsets = [2, 0, 0], sizes = [1, 2, 128], strides = [1, 1, 1]} : vector<4x2x128xf32> to vector<1x2x128xf32>
    %46 = vector.shape_cast %45 : vector<1x2x128xf32> to vector<2x128xf32>
    %cst_17 = arith.constant 0.000000e+00 : f32
    %47 = vector.broadcast %cst_17 : f32 to vector<2x128xf32>
    %48 = arith.select %44, %46, %47 : vector<2x128xi1>, vector<2x128xf32>
    %cst_18 = arith.constant dense<0.000000e+00> : vector<128xf32>
    %49 = vector.multi_reduction <add>, %48, %cst_18 [0] : vector<2x128xf32> to vector<128xf32>
    %50 = vector.shape_cast %49 : vector<128xf32> to vector<1x128xf32>
    %51 = arith.extui %44 : vector<2x128xi1> to vector<2x128xi32>
    %52 = arith.sitofp %51 : vector<2x128xi32> to vector<2x128xf32>
    %cst_19 = arith.constant dense<0.000000e+00> : vector<128xf32>
    %53 = vector.multi_reduction <add>, %52, %cst_19 [0] : vector<2x128xf32> to vector<128xf32>
    %54 = vector.shape_cast %53 : vector<128xf32> to vector<1x128xf32>
    %c3_i32 = arith.constant 3 : i32
    %55 = vector.broadcast %c3_i32 : i32 to vector<2x128xi32>
    %56 = arith.cmpi eq, %18, %55 : vector<2x128xi32>
    %57 = vector.extract_strided_slice %15 {offsets = [3, 0, 0], sizes = [1, 2, 128], strides = [1, 1, 1]} : vector<4x2x128xf32> to vector<1x2x128xf32>
    %58 = vector.shape_cast %57 : vector<1x2x128xf32> to vector<2x128xf32>
    %cst_20 = arith.constant 0.000000e+00 : f32
    %59 = vector.broadcast %cst_20 : f32 to vector<2x128xf32>
    %60 = arith.select %56, %58, %59 : vector<2x128xi1>, vector<2x128xf32>
    %cst_21 = arith.constant dense<0.000000e+00> : vector<128xf32>
    %61 = vector.multi_reduction <add>, %60, %cst_21 [0] : vector<2x128xf32> to vector<128xf32>
    %62 = vector.shape_cast %61 : vector<128xf32> to vector<1x128xf32>
    %63 = arith.extui %56 : vector<2x128xi1> to vector<2x128xi32>
    %64 = arith.sitofp %63 : vector<2x128xi32> to vector<2x128xf32>
    %cst_22 = arith.constant dense<0.000000e+00> : vector<128xf32>
    %65 = vector.multi_reduction <add>, %64, %cst_22 [0] : vector<2x128xf32> to vector<128xf32>
    %66 = vector.shape_cast %65 : vector<128xf32> to vector<1x128xf32>
    %67 = tpu.concatenate %26, %38, %50, %62 in 0 : vector<1x128xf32>, vector<1x128xf32>, vector<1x128xf32>, vector<1x128xf32> -> vector<4x128xf32>
    %68 = tpu.concatenate %30, %42, %54, %66 in 0 : vector<1x128xf32>, vector<1x128xf32>, vector<1x128xf32>, vector<1x128xf32> -> vector<4x128xf32>
    %c0_23 = arith.constant 0 : index
    %c0_24 = arith.constant 0 : index
    %c0_25 = arith.constant 0 : index
    %c0_26 = arith.constant 0 : index
    %69 = vector.load %arg4[%c0_23, %c0_24, %c0_25, %c0_26] : memref<1x3x4x128xf32, #tpu.memory_space<vmem>>, vector<1x1x4x128xf32>
    %70 = vector.shape_cast %69 : vector<1x1x4x128xf32> to vector<4x128xf32>
    %71 = arith.addf %70, %67 : vector<4x128xf32>
    %c0_27 = arith.constant 0 : index
    %c0_28 = arith.constant 0 : index
    %c0_29 = arith.constant 0 : index
    %c0_30 = arith.constant 0 : index
    %72 = vector.load %arg4[%c0_27, %c0_28, %c0_29, %c0_30] : memref<1x3x4x128xf32, #tpu.memory_space<vmem>>, vector<1x1x4x128xf32>
    %73 = vector.shape_cast %72 : vector<1x1x4x128xf32> to vector<4x128xf32>
    %74 = vector.shape_cast %71 : vector<4x128xf32> to vector<1x1x4x128xf32>
    tpu.vector_store %arg4[%c0_27, %c0_28, %c0_29, %c0_30], %74 {strides = array<i32>} : memref<1x3x4x128xf32, #tpu.memory_space<vmem>>, vector<1x1x4x128xf32>,
    %c0_31 = arith.constant 0 : index
    %c1 = arith.constant 1 : index
    %c0_32 = arith.constant 0 : index
    %c0_33 = arith.constant 0 : index
    %75 = vector.load %arg4[%c0_31, %c1, %c0_32, %c0_33] : memref<1x3x4x128xf32, #tpu.memory_space<vmem>>, vector<1x1x4x128xf32>
    %76 = vector.shape_cast %75 : vector<1x1x4x128xf32> to vector<4x128xf32>
    %77 = arith.addf %76, %16 : vector<4x128xf32>
    %c0_34 = arith.constant 0 : index
    %c1_35 = arith.constant 1 : index
    %c0_36 = arith.constant 0 : index
    %c0_37 = arith.constant 0 : index
    %78 = vector.load %arg4[%c0_34, %c1_35, %c0_36, %c0_37] : memref<1x3x4x128xf32, #tpu.memory_space<vmem>>, vector<1x1x4x128xf32>
    %79 = vector.shape_cast %78 : vector<1x1x4x128xf32> to vector<4x128xf32>
    %80 = vector.shape_cast %77 : vector<4x128xf32> to vector<1x1x4x128xf32>
    tpu.vector_store %arg4[%c0_34, %c1_35, %c0_36, %c0_37], %80 {strides = array<i32>} : memref<1x3x4x128xf32, #tpu.memory_space<vmem>>, vector<1x1x4x128xf32>,
    %c0_38 = arith.constant 0 : index
    %c2 = arith.constant 2 : index
    %c0_39 = arith.constant 0 : index
    %c0_40 = arith.constant 0 : index
    %81 = vector.load %arg4[%c0_38, %c2, %c0_39, %c0_40] : memref<1x3x4x128xf32, #tpu.memory_space<vmem>>, vector<1x1x4x128xf32>
    %82 = vector.shape_cast %81 : vector<1x1x4x128xf32> to vector<4x128xf32>
    %83 = arith.addf %82, %68 : vector<4x128xf32>
    %c0_41 = arith.constant 0 : index
    %c2_42 = arith.constant 2 : index
    %c0_43 = arith.constant 0 : index
    %c0_44 = arith.constant 0 : index
    %84 = vector.load %arg4[%c0_41, %c2_42, %c0_43, %c0_44] : memref<1x3x4x128xf32, #tpu.memory_space<vmem>>, vector<1x1x4x128xf32>
    %85 = vector.shape_cast %84 : vector<1x1x4x128xf32> to vector<4x128xf32>
    %86 = vector.shape_cast %83 : vector<4x128xf32> to vector<1x1x4x128xf32>
    tpu.vector_store %arg4[%c0_41, %c2_42, %c0_43, %c0_44], %86 {strides = array<i32>} : memref<1x3x4x128xf32, #tpu.memory_space<vmem>>, vector<1x1x4x128xf32>,
    return
  }
  func.func @transform_0(%arg0: i32, %arg1: i32) -> (i32, i32, i32, i32) {
    %c0_i32 = arith.constant 0 : i32
    %c0_i32_0 = arith.constant 0 : i32
    %c0_i32_1 = arith.constant 0 : i32
    return %arg0, %c0_i32, %arg1, %c0_i32_0 : i32, i32, i32, i32
  }
  func.func @transform_1(%arg0: i32, %arg1: i32) -> (i32, i32, i32) {
    %c0_i32 = arith.constant 0 : i32
    %c0_i32_0 = arith.constant 0 : i32
    return %arg0, %arg1, %c0_i32 : i32, i32, i32
  }
  func.func @transform_2(%arg0: i32, %arg1: i32) -> (i32, i32, i32, i32) {
    %c0_i32 = arith.constant 0 : i32
    %c0_i32_0 = arith.constant 0 : i32
    %c0_i32_1 = arith.constant 0 : i32
    %c0_i32_2 = arith.constant 0 : i32
    return %arg0, %c0_i32, %c0_i32_0, %c0_i32_1 : i32, i32, i32, i32
  }
}

</mosaic_0001>

<llo_original>
// kernel: tpu_custom_call.1
$region0: #{tpu_custom_call.1}
  #allocation0 [shape = 'u32[]', space=smem, size = 0x4, offset = 0x4, fixed_abs, tag = 'smem constant byte address 0x4 - core index']
  #allocation1 [shape = 'u32[144,128]{1,0:T(1,128)}', space=vmem, size = 0x12000, scoped, tag = 'internal scratch']
  %s0 = inlined_call_operand.hbm [shape: f32[2,4,2,128], index: 0, kind: input, shape index: {}]
  %s1 = inlined_call_operand.hbm [shape: s32[2,2,128], index: 1, kind: input, shape index: {}]
  %s2 = inlined_call_operand.hbm [shape: f32[2,3,4,128], index: 2, kind: output, shape index: {}]
  %s3 = sld [smem:[#allocation0]]
  $region53: #{tpu_custom_call.1} parent=0
    _
  %s5 = ssub.s32 1, %s3
  %s6 = scalar_select 0, %s5, %s3
  $region1: #{tpu_custom_call.1} parent=0
    #allocation2 [shape = 'u8[8192]{0}', space=vmem, size = 0x2000, scoped, tag = 'input window, operand 0']
    #allocation3 [shape = 's32[2]{0}', space=sflag, size = 0x8, scoped, tag = 'scoped memory for tpu_custom_call.1']
    #allocation4 [shape = 's32[2]{0}', space=sflag, size = 0x8, scoped, tag = 'scoped memory for tpu_custom_call.1']
    #allocation5 [shape = 'u8[2048]{0}', space=vmem, size = 0x800, scoped, tag = 'input window, operand 1']
    #allocation6 [shape = 's32[2]{0}', space=sflag, size = 0x8, scoped, tag = 'scoped memory for tpu_custom_call.1']
    #allocation7 [shape = 'u8[12288]{0}', space=vmem, size = 0x3000, scoped, tag = 'output window, operand 0']
    %7 = vsyncpa [#allocation3], 0
    %s8 = scalar_lea.sflag [#allocation3], 1
    %9 = vsyncpa %s8, 0
    %10 = vsyncpa [#allocation6], 0
    %s11 = scalar_lea.sflag [#allocation6], 1
    %12 = vsyncpa %s11, 0
    %13 = vsyncpa [#allocation4], 0
    %s14 = scalar_lea.sflag [#allocation4], 1
    %15 = vsyncpa %s14, 0
    loop: start=0, step=1, limit=4
    $region2: #{tpu_custom_call.1} parent=1 // loop_pre_header
      _
    $region3: #{tpu_custom_call.1} parent=1 // loop_header
      %s17 = sphi 0, %s21
      %p18 = scmp.ge.s32.totalorder %s17, 4
      %s24 = sphi 0, %s36
      %s25 = sphi 0, %s32
      %s26 = sphi 0, %s24
      %s27 = sphi 0, %s25
      %s28 = sphi 0, %s26
      %s29 = sphi 0, %s27
      %s41 = sphi 0, %s43
      %s44 = sphi 0, %s41
      %s45 = sphi 0, %s44
      %s61 = sphi 0, %s45
      %s69 = sphi 0, %s71
      %s72 = sphi 0, %s69
      %s73 = sphi 0, %s72
      %s89 = sphi 0, %s73
      %s95 = sphi 0, %s97
      %s98 = sphi 0, %s95
      %s99 = sphi 0, %s98
      %s115 = sphi 0, %s99
    $region4: #{tpu_custom_call.1} parent=1 // loop_header_branch
      %20 = sbr.rel (%p18) target = $region8
    $region5: #{tpu_custom_call.1} parent=1 // loop_body
      %s22 = ssub.s32 %s17, 1
      %s23 = ssub.s32 %s17, 2
      %s30 = sadd.s32 1, %s25
      %p31 = scmp.ge.s32.totalorder %s30, 1
      %s32 = scalar_select %p31, 0, %s30
      %s33 = sadd.s32 1, %s24
      %s34 = scalar_select %p31, %s33, %s24
      %p35 = scmp.ge.s32.totalorder %s34, 2
      %s36 = scalar_select %p35, 0, %s34
      %s37 = ssub.s32 %s24, %s36
      %s38 = ssub.s32 %s25, %s32
      %s39 = sor.u32 %s37, %s38
      %p40 = scmp.eq.s32.totalorder %s39, 0
      %s42 = sadd.s32 %s41, 1
      %s43 = scalar_select %p40, %s41, %s42
      %p46 = pneg %p40
      %p47 = scmp.eq.s32.totalorder %s17, 1
      %p48 = por %p46, %p47
      %p49 = scmp.ne.s32.totalorder %s41, %s44
      %p50 = scmp.eq.s32.totalorder %s17, 0
      %p51 = por %p49, %p50
      %p52 = scmp.ne.s32.totalorder %s41, %s44
      %p53 = scmp.eq.s32.totalorder %s22, 1
      %p54 = por %p52, %p53
      %p55 = scmp.ne.s32.totalorder %s44, %s45
      %p56 = scmp.eq.s32.totalorder %s22, 0
      %p57 = por %p55, %p56
      %p58 = scmp.ne.s32.totalorder %s44, %s45
      %p59 = scmp.eq.s32.totalorder %s23, 1
      %p60 = por %p58, %p59
      %p62 = scmp.ne.s32.totalorder %s45, %s61
      %p63 = scmp.eq.s32.totalorder %s23, 0
      %p64 = por %p62, %p63
      %s65 = ssub.s32 %s24, %s36
      %s66 = ssub.s32 %s25, %s32
      %s67 = sor.u32 %s65, %s66
      %p68 = scmp.eq.s32.totalorder %s67, 0
      %s70 = sadd.s32 %s69, 1
      %s71 = scalar_select %p68, %s69, %s70
      %p74 = pneg %p68
      %p75 = scmp.eq.s32.totalorder %s17, 1
      %p76 = por %p74, %p75
      %p77 = scmp.ne.s32.totalorder %s69, %s72
      %p78 = scmp.eq.s32.totalorder %s17, 0
      %p79 = por %p77, %p78
      %p80 = scmp.ne.s32.totalorder %s69, %s72
      %p81 = scmp.eq.s32.totalorder %s22, 1
      %p82 = por %p80, %p81
      %p83 = scmp.ne.s32.totalorder %s72, %s73
      %p84 = scmp.eq.s32.totalorder %s22, 0
      %p85 = por %p83, %p84
      %p86 = scmp.ne.s32.totalorder %s72, %s73
      %p87 = scmp.eq.s32.totalorder %s23, 1
      %p88 = por %p86, %p87
      %p90 = scmp.ne.s32.totalorder %s73, %s89
      %p91 = scmp.eq.s32.totalorder %s23, 0
      %p92 = por %p90, %p91
      %s93 = ssub.s32 %s24, %s36
      %p94 = scmp.eq.s32.totalorder %s93, 0
      %s96 = sadd.s32 %s95, 1
      %s97 = scalar_select %p94, %s95, %s96
      %p100 = pneg %p94
      %p101 = scmp.eq.s32.totalorder %s17, 1
      %p102 = por %p100, %p101
      %p103 = scmp.ne.s32.totalorder %s95, %s98
      %p104 = scmp.eq.s32.totalorder %s17, 0
      %p105 = por %p103, %p104
      %p106 = scmp.ne.s32.totalorder %s95, %s98
      %p107 = scmp.eq.s32.totalorder %s22, 1
      %p108 = por %p106, %p107
      %p109 = scmp.ne.s32.totalorder %s98, %s99
      %p110 = scmp.eq.s32.totalorder %s22, 0
      %p111 = por %p109, %p110
      %p112 = scmp.ne.s32.totalorder %s98, %s99
      %p113 = scmp.eq.s32.totalorder %s23, 1
      %p114 = por %p112, %p113
      %p116 = scmp.ne.s32.totalorder %s99, %s115
      %p117 = scmp.eq.s32.totalorder %s23, 0
      %p118 = por %p116, %p117
      %p119 = scmp.le.s32.totalorder 1, %s17
      %p120 = scmp.lt.s32.totalorder %s17, 3
      %p121 = pnand %p119, %p120
      %p122 = pneg %p121
      // Predicated region
      $region9: #{tpu_custom_call.1} parent=5 // pred_check
        _
      $region10: #{tpu_custom_call.1} parent=5 // pred_check_branch
        %124 = sbr.rel (%p121) target = $region12
      $region11: #{tpu_custom_call.1} parent=5 // pred_region
        %s125 = ssub.s32 %s17, 1
      $region12: #{tpu_custom_call.1} parent=5 // pred_fallthru
        _
      %p126 = scmp.lt.s32.totalorder %s17, 2
      // Predicated region
      $region13: #{tpu_custom_call.1} parent=5 // pred_check
        %p127 = pneg %p126
      $region14: #{tpu_custom_call.1} parent=5 // pred_check_branch
        %129 = sbr.rel (%p127) target = $region16
      $region15: #{tpu_custom_call.1} parent=5 // pred_region
        // Predicated region
        $region17: #{tpu_custom_call.1} parent=15 // pred_check
          %p130 = pneg %p51
        $region18: #{tpu_custom_call.1} parent=15 // pred_check_branch
          %132 = sbr.rel (%p130) target = $region20
        $region19: #{tpu_custom_call.1} parent=15 // pred_region
          %s133 = sand.u32 %s41, 1
          %s134 = scalar_lea.sflag [#allocation3], %s133
          %s135 = sand.u32 %s41, 1
          %s136 = smul.addr %s135, 8
          %s137 = scalar_lea.vmem [#allocation2], %s136
          %s139 = ssub.s32 128, 128
          %140 = vsyncadd %s134, %s139
          %s141 = smul.addr %s24, 4
          %s142 = sadd.s32 %s25, %s141
          %s143 = smul.addr %s142, 32
          %s144 = scalar_lea.hbm %s0, %s143
          %s145 = sshll.u32 %s137, 4
          %s146 = int_to_ptr.vmem [resolvable:$true] %s145
          %151 = dma.hbm_to_vmem [thread:$0]  %s144, 128, %s146, %s134, 32, 32, 2
        $region20: #{tpu_custom_call.1} parent=15 // pred_fallthru
          _
        // Predicated region
        $region21: #{tpu_custom_call.1} parent=15 // pred_check
          %p152 = pneg %p79
        $region22: #{tpu_custom_call.1} parent=15 // pred_check_branch
          %154 = sbr.rel (%p152) target = $region24
        $region23: #{tpu_custom_call.1} parent=15 // pred_region
          %s155 = sand.u32 %s69, 1
          %s156 = scalar_lea.sflag [#allocation6], %s155
          %s157 = sand.u32 %s69, 1
          %s158 = smul.addr %s157, 2
          %s159 = scalar_lea.vmem [#allocation5], %s158
          %s161 = ssub.s32 32, 32
          %162 = vsyncadd %s156, %s161
          %s163 = sadd.s32 %s25, %s24
          %s164 = smul.addr %s163, 32
          %s165 = scalar_lea.hbm %s1, %s164
          %s167 = sshll.u32 %s159, 4
          %s168 = int_to_ptr.vmem [resolvable:$true] %s167
          %170 = dma.hbm_to_vmem [thread:$0]  %s165, 32, %s168, %s156
        $region24: #{tpu_custom_call.1} parent=15 // pred_fallthru
          _
      $region16: #{tpu_custom_call.1} parent=5 // pred_fallthru
        _
      %p171 = scmp.le.s32.totalorder 1, %s17
      %p172 = scmp.lt.s32.totalorder %s17, 3
      %p173 = pnand %p171, %p172
      %p174 = pneg %p173
      // Predicated region
      $region25: #{tpu_custom_call.1} parent=5 // pred_check
        _
      $region26: #{tpu_custom_call.1} parent=5 // pred_check_branch
        %176 = sbr.rel (%p173) target = $region28
      $region27: #{tpu_custom_call.1} parent=5 // pred_region
        %s177 = ssub.s32 %s17, 1
        %s178 = sand.u32 %s44, 1
        %s179 = scalar_lea.sflag [#allocation3], %s178
        %s180 = sand.u32 %s44, 1
        %s181 = smul.addr %s180, 8
        %s182 = scalar_lea.vmem [#allocation2], %s181
        // Predicated region
        $region29: #{tpu_custom_call.1} parent=27 // pred_check
          %p183 = pneg %p57
        $region30: #{tpu_custom_call.1} parent=27 // pred_check_branch
          %185 = sbr.rel (%p183) target = $region32
        $region31: #{tpu_custom_call.1} parent=27 // pred_region
          %186 = dma.done %s179, 128
        $region32: #{tpu_custom_call.1} parent=27 // pred_fallthru
          _
        %s187 = sand.u32 %s72, 1
        %s188 = scalar_lea.sflag [#allocation6], %s187
        %s189 = sand.u32 %s72, 1
        %s190 = smul.addr %s189, 2
        %s191 = scalar_lea.vmem [#allocation5], %s190
        // Predicated region
        $region33: #{tpu_custom_call.1} parent=27 // pred_check
          %p192 = pneg %p85
        $region34: #{tpu_custom_call.1} parent=27 // pred_check_branch
          %194 = sbr.rel (%p192) target = $region36
        $region35: #{tpu_custom_call.1} parent=27 // pred_region
          %195 = dma.done %s188, 32
        $region36: #{tpu_custom_call.1} parent=27 // pred_fallthru
          _
        %s196 = sand.u32 %s44, 1
        %s197 = scalar_lea.sflag [#allocation3], %s196
        %s198 = sand.u32 %s44, 1
        %s199 = smul.addr %s198, 8
        %s200 = scalar_lea.vmem [#allocation2], %s199
        %p201 = pneg %p57
        %p202 = pneg %p54
        %s203 = sand.u32 %s72, 1
        %s204 = scalar_lea.sflag [#allocation6], %s203
        %s205 = sand.u32 %s72, 1
        %s206 = smul.addr %s205, 2
        %s207 = scalar_lea.vmem [#allocation5], %s206
        %p208 = pneg %p85
        %p209 = pneg %p82
        %p210 = pneg %p111
        %p211 = pneg %p108
        %s212 = sand.u32 %s98, 1
        %s213 = scalar_lea.sflag [#allocation4], %s212
        %s214 = sand.u32 %s98, 1
        %s215 = smul.addr %s214, 12
        %s216 = scalar_lea.vmem [#allocation7], %s215
        %p217 = scmp.eq.s32.totalorder %s27, 0
        // Predicated region
        $region37: #{tpu_custom_call.1} parent=27 // pred_check
          %p218 = pneg %p217
        $region38: #{tpu_custom_call.1} parent=27 // pred_check_branch
          %220 = sbr.rel (%p218) target = $region40
        $region39: #{tpu_custom_call.1} parent=27 // pred_region
          %221 = vst [vmem:[%s216] sm:$0xf] 0.0
          %222 = vst [vmem:[%s216 + $0x4] sm:$0xf] 0.0
          %223 = vst [vmem:[%s216 + $0x8] sm:$0xf] 0.0
        $region40: #{tpu_custom_call.1} parent=27 // pred_fallthru
          _
        %v224 = vld [vmem:[%s182] sm:$0x3]
        %v225 = vld [vmem:[%s182 + $0x2] sm:$0x3]
        %v226 = vld [vmem:[%s182 + $0x4] sm:$0x3]
        %v227 = vld [vmem:[%s182 + $0x6] sm:$0x3]
        %vm228 = vcmask 1041408
        %v229 = vsel %vm228, %v224, -inf
        %v230 = vsel %vm228, %v225, -inf
        %v231 = vsel %vm228, %v226, -inf
        %v232 = vsel %vm228, %v227, -inf
        %v233 = vmax.f32 %v229, %v230
        %v234 = vmax.f32 %v231, %v232
        %v235 = vmax.f32 %v233, %v234
        %v236 = vsub.f32 %v224, %v235
        %v237 = vsub.f32 %v225, %v235
        %v238 = vsub.f32 %v226, %v235
        %v239 = vsub.f32 %v227, %v235
        %v240 = vmul.f32 %v236, 1.442695
        %v241 = vpow.pop %v240
        %v242 = vmul.f32 %v237, 1.442695
        %v243 = vpow.pop %v242
        %v244 = vmul.f32 %v238, 1.442695
        %v245 = vpow.pop %v244
        %v246 = vmul.f32 %v239, 1.442695
        %v247 = vpow.pop %v246
        %v248 = vsel %vm228, %v241, 0.0
        %v249 = vsel %vm228, %v243, 0.0
        %v250 = vadd.f32 %v248, %v249
        %v251 = vsel %vm228, %v245, 0.0
        %v252 = vadd.f32 %v250, %v251
        %v253 = vsel %vm228, %v247, 0.0
        %v254 = vadd.f32 %v252, %v253
        %v255 = vrcp.pop %v254
        %v256 = vmul.f32 1.0, %v255
        %v257 = vmul.f32 %v241, %v256
        %v258 = vmul.f32 %v243, %v256
        %v259 = vmul.f32 %v245, %v256
        %v260 = vmul.f32 %v247, %v256
        %v261 = vsel %vm228, %v257, 0.0
        %v262 = vrot.slane %v261, 4
        %v263 = vadd.f32 %v261, %v262
        %v264 = vrot.slane %v263, 2
        %v265 = vadd.f32 %v263, %v264
        %v266 = vrot.slane %v265, 1
        %v267 = vadd.f32 %v265, %v266
        %v268 = vsel %vm228, %v258, 0.0
        %v269 = vrot.slane %v268, 4
        %v270 = vadd.f32 %v268, %v269
        %v271 = vrot.slane %v270, 2
        %v272 = vadd.f32 %v270, %v271
        %v273 = vrot.slane %v272, 1
        %v274 = vadd.f32 %v272, %v273
        %v275 = vsel %vm228, %v259, 0.0
        %v276 = vrot.slane %v275, 4
        %v277 = vadd.f32 %v275, %v276
        %v278 = vrot.slane %v277, 2
        %v279 = vadd.f32 %v277, %v278
        %v280 = vrot.slane %v279, 1
        %v281 = vadd.f32 %v279, %v280
        %v282 = vsel %vm228, %v260, 0.0
        %v283 = vrot.slane %v282, 4
        %v284 = vadd.f32 %v282, %v283
        %v285 = vrot.slane %v284, 2
        %v286 = vadd.f32 %v284, %v285
        %v287 = vrot.slane %v286, 1
        %v288 = vadd.f32 %v286, %v287
        %v289 = vld [vmem:[%s191] sm:$0x3]
        %vm290 = vcmp.eq.s32.totalorder %v289, 0
        %v291 = vsel %vm290, %v257, 0.0
        %v292 = vsel %vm228, %v291, 0.0
        %v293 = vrot.slane %v292, 4
        %v294 = vadd.f32 %v292, %v293
        %v295 = vrot.slane %v294, 2
        %v296 = vadd.f32 %v294, %v295
        %v297 = vrot.slane %v296, 1
        %v298 = vadd.f32 %v296, %v297
        %v299 = vsel %vm290, 1, 0
        %v300 = vcvt.s32.f32 %v299
        %v301 = vsel %vm228, %v300, 0.0
        %v302 = vrot.slane %v301, 4
        %v303 = vadd.f32 %v301, %v302
        %v304 = vrot.slane %v303, 2
        %v305 = vadd.f32 %v303, %v304
        %v306 = vrot.slane %v305, 1
        %v307 = vadd.f32 %v305, %v306
        %vm308 = vcmp.eq.s32.totalorder %v289, 1
        %v309 = vsel %vm308, %v258, 0.0
        %v310 = vsel %vm228, %v309, 0.0
        %v311 = vrot.slane %v310, 4
        %v312 = vadd.f32 %v310, %v311
        %v313 = vrot.slane %v312, 2
        %v314 = vadd.f32 %v312, %v313
        %v315 = vrot.slane %v314, 1
        %v316 = vadd.f32 %v314, %v315
        %v317 = vsel %vm308, 1, 0
        %v318 = vcvt.s32.f32 %v317
        %v319 = vsel %vm228, %v318, 0.0
        %v320 = vrot.slane %v319, 4
        %v321 = vadd.f32 %v319, %v320
        %v322 = vrot.slane %v321, 2
        %v323 = vadd.f32 %v321, %v322
        %v324 = vrot.slane %v323, 1
        %v325 = vadd.f32 %v323, %v324
        %vm326 = vcmp.eq.s32.totalorder %v289, 2
        %v327 = vsel %vm326, %v259, 0.0
        %v328 = vsel %vm228, %v327, 0.0
        %v329 = vrot.slane %v328, 4
        %v330 = vadd.f32 %v328, %v329
        %v331 = vrot.slane %v330, 2
        %v332 = vadd.f32 %v330, %v331
        %v333 = vrot.slane %v332, 1
        %v334 = vadd.f32 %v332, %v333
        %v335 = vsel %vm326, 1, 0
        %v336 = vcvt.s32.f32 %v335
        %v337 = vsel %vm228, %v336, 0.0
        %v338 = vrot.slane %v337, 4
        %v339 = vadd.f32 %v337, %v338
        %v340 = vrot.slane %v339, 2
        %v341 = vadd.f32 %v339, %v340
        %v342 = vrot.slane %v341, 1
        %v343 = vadd.f32 %v341, %v342
        %vm344 = vcmp.eq.s32.totalorder %v289, 3
        %v345 = vsel %vm344, %v260, 0.0
        %v346 = vsel %vm228, %v345, 0.0
        %v347 = vrot.slane %v346, 4
        %v348 = vadd.f32 %v346, %v347
        %v349 = vrot.slane %v348, 2
        %v350 = vadd.f32 %v348, %v349
        %v351 = vrot.slane %v350, 1
        %v352 = vadd.f32 %v350, %v351
        %v353 = vsel %vm344, 1, 0
        %v354 = vcvt.s32.f32 %v353
        %v355 = vsel %vm228, %v354, 0.0
        %v356 = vrot.slane %v355, 4
        %v357 = vadd.f32 %v355, %v356
        %v358 = vrot.slane %v357, 2
        %v359 = vadd.f32 %v357, %v358
        %v360 = vrot.slane %v359, 1
        %v361 = vadd.f32 %v359, %v360
        %vm362 = vcmask 1040384
        %v363 = vsel %vm362, %v298, %v316
        %v364 = vsel %vm228, %v363, %v334
        %vm365 = vcmask 1042432
        %v366 = vsel %vm365, %v364, %v352
        %v367 = vsel %vm362, %v307, %v325
        %v368 = vsel %vm228, %v367, %v343
        %v369 = vsel %vm365, %v368, %v361
        %v370 = vld [vmem:[%s216] sm:$0xf]
        %v371 = vadd.f32 %v370, %v366
        %372 = vst [vmem:[%s216] sm:$0xf] %v371
        %s373 = scalar_lea.vmem %s216, 4 [#allocation7]
        %v374 = vld [vmem:[%s373] sm:$0xf]
        %vm379 = vcmask 1041409
        %v380 = vsel %vm379, %v274, %v267
        %vm381 = vcmask 1042434
        %v382 = vsel %vm381, %v281, %v380
        %vm383 = vcmask 1043459
        %v384 = vsel %vm383, %v288, %v382
        %v386 = vadd.f32 %v374, %v384
        %387 = vst [vmem:[%s373] sm:$0xf] %v386
        %s388 = scalar_lea.vmem %s216, 8 [#allocation7]
        %v389 = vld [vmem:[%s388] sm:$0xf]
        %v390 = vadd.f32 %v389, %v369
        %391 = vst [vmem:[%s388] sm:$0xf] %v390
        %s392 = sand.u32 %s98, 1
        %s393 = scalar_lea.sflag [#allocation4], %s392
        %s394 = sand.u32 %s98, 1
        %s395 = smul.addr %s394, 12
        %s396 = scalar_lea.vmem [#allocation7], %s395
        // Predicated region
        $region41: #{tpu_custom_call.1} parent=27 // pred_check
          %p397 = pneg %p108
        $region42: #{tpu_custom_call.1} parent=27 // pred_check_branch
          %399 = sbr.rel (%p397) target = $region44
        $region43: #{tpu_custom_call.1} parent=27 // pred_region
          %s401 = ssub.s32 192, 192
          %402 = vsyncadd %s393, %s401
          %s403 = smul.addr %s26, 3
          %s404 = smul.addr %s403, 64
          %s405 = scalar_lea.hbm %s2, %s404
          %s406 = sshll.u32 %s396, 4
          %s407 = int_to_ptr.vmem [resolvable:$true] %s406
          %412 = dma.vmem_to_hbm [thread:$0]  %s407, 192, %s405, %s393, 64, 64, 4
        $region44: #{tpu_custom_call.1} parent=27 // pred_fallthru
          _
      $region28: #{tpu_custom_call.1} parent=5 // pred_fallthru
        _
      %p413 = scmp.le.s32.totalorder 2, %s17
      // Predicated region
      $region45: #{tpu_custom_call.1} parent=5 // pred_check
        %p414 = pneg %p413
      $region46: #{tpu_custom_call.1} parent=5 // pred_check_branch
        %416 = sbr.rel (%p414) target = $region48
      $region47: #{tpu_custom_call.1} parent=5 // pred_region
        %s417 = ssub.s32 %s17, 2
        // Predicated region
        $region49: #{tpu_custom_call.1} parent=47 // pred_check
          %p418 = pneg %p114
        $region50: #{tpu_custom_call.1} parent=47 // pred_check_branch
          %420 = sbr.rel (%p418) target = $region52
        $region51: #{tpu_custom_call.1} parent=47 // pred_region
          %s421 = sand.u32 %s99, 1
          %s422 = scalar_lea.sflag [#allocation4], %s421
          %s423 = sand.u32 %s99, 1
          %s424 = smul.addr %s423, 12
          %s425 = scalar_lea.vmem [#allocation7], %s424
          %426 = dma.done %s422, 192
        $region52: #{tpu_custom_call.1} parent=47 // pred_fallthru
          _
      $region48: #{tpu_custom_call.1} parent=5 // pred_fallthru
        _
    $region6: #{tpu_custom_call.1} parent=1 // loop_footer
      %s21 = sadd.s32 1, %s17
    $region7: #{tpu_custom_call.1} parent=1 // loop_footer_branch
      %16 = sbr.rel target = $region3
    $region8: #{tpu_custom_call.1} parent=1 // loop_exit
      _
    %427 = vsyncpa [#allocation3], 1
    %s428 = scalar_lea.sflag [#allocation3], 1
    %429 = vsyncpa %s428, 1
    %430 = vsyncpa [#allocation6], 1
    %s431 = scalar_lea.sflag [#allocation6], 1
    %432 = vsyncpa %s431, 1
    %433 = vsyncpa [#allocation4], 1
    %s434 = scalar_lea.sflag [#allocation4], 1
    %435 = vsyncpa %s434, 1

</llo_original>
